<compile_context>
chip_gen: v7x
topology: tpu7x:2x2x1
jax: 0.10.0
libtpu: 0.0.40
codegen_flags: <defaults>
</compile_context>

<pallas_src>
import jax
import jax.numpy as jnp
from jax.experimental import pallas as pl
from jax.experimental.pallas import tpu as pltpu

# MLP dims: 1 -> 32 -> 64 -> 128 -> 32 -> 16 -> 1
DIMS = [1, 32, 64, 128, 32, 16, 1]


def mlp_kernel(x_ref,
               w1_ref, b1_ref, w2_ref, b2_ref, w3_ref, b3_ref,
               w4_ref, b4_ref, w5_ref, b5_ref, w6_ref, b6_ref,
               o_ref):
    """Fused forward for one lane-dense batch tile (everything in VMEM).

    Activations are (features, tile_b): batch on lanes, features on sublanes.
    """
    x = x_ref[...]                                               # (1, tb)

    # Layer 1 (in_features = 1): a K=1 MXU matmul is >99% zero padding, so do
    # the outer product on the VPU via broadcasting: (32,1)*(1,tb) + (32,1).
    h = jnp.maximum(w1_ref[...] * x + b1_ref[...], 0.0)          # (32, tb)

    def dense_relu(h, w_ref, b_ref):
        # Weights stored as (out, in); y = W @ h, wide N = tile_b on the MXU.
        y = jnp.dot(w_ref[...], h, preferred_element_type=jnp.float32)
        return jnp.maximum(y + b_ref[...], 0.0)

    h = dense_relu(h, w2_ref, b2_ref)                            # (64,  tb)
    h = dense_relu(h, w3_ref, b3_ref)                            # (128, tb)
    h = dense_relu(h, w4_ref, b4_ref)                            # (32,  tb)
    h = dense_relu(h, w5_ref, b5_ref)                            # (16,  tb)

    # Layer 6 (out_features = 1): M=1 wastes the MXU tile; do a VPU multiply
    # plus a 16-sublane (XLU) reduction. w6 is passed as (16, 1).
    y = jnp.sum(w6_ref[...] * h, axis=0, keepdims=True) + b6_ref[...]  # (1, tb)
    o_ref[...] = y.astype(o_ref.dtype)


def init_params(key):
    """PyTorch nn.Linear default init: W (out, in), b (out,), both
    U(-1/sqrt(fan_in), 1/sqrt(fan_in))."""
    params = []
    for i in range(len(DIMS) - 1):
        fan_in, fan_out = DIMS[i], DIMS[i + 1]
        key, kw, kb = jax.random.split(key, 3)
        bound = 1.0 / (fan_in ** 0.5)
        w = jax.random.uniform(kw, (fan_out, fan_in), jnp.float32,
                               minval=-bound, maxval=bound)
        b = jax.random.uniform(kb, (fan_out,), jnp.float32,
                               minval=-bound, maxval=bound)
        params.append((w, b))
    return params


def net_forward(x, params, *, tile_b=256):
    """x: (B, 1) float32 -> (B, 1) float32 (same semantics as the PyTorch Net)."""
    B = x.shape[0]
    assert x.shape == (B, 1)

    # Small batches: single grid step covering the whole batch.
    if B < tile_b:
        tile_b = B
    assert B % tile_b == 0, "batch must be a multiple of tile_b"
    # Lane-dense blocks: tile_b must be a multiple of 128 or the full batch.
    assert tile_b == B or tile_b % 128 == 0

    # Batch onto the lane axis.
    x_lanes = x.reshape(1, B)

    # Kernel-facing parameter layout:
    #   layers 1-5: W as (out, in), bias as (out, 1)
    #   layer 6:    W as (in, 1) = W6.T (for the VPU reduce), bias as (1, 1)
    (w1, b1), (w2, b2), (w3, b3), (w4, b4), (w5, b5), (w6, b6) = params
    kernel_params = [
        w1,                b1.reshape(-1, 1),
        w2,                b2.reshape(-1, 1),
        w3,                b3.reshape(-1, 1),
        w4,                b4.reshape(-1, 1),
        w5,                b5.reshape(-1, 1),
        w6.reshape(-1, 1), b6.reshape(1, 1),
    ]

    x_spec = pl.BlockSpec((1, tile_b), lambda i: (0, i))
    o_spec = pl.BlockSpec((1, tile_b), lambda i: (0, i))
    # Whole-array blocks with a constant index_map: fetched once, reused
    # across all (parallel) batch steps.
    param_specs = [pl.BlockSpec(p.shape, lambda i: (0, 0)) for p in kernel_params]

    out = pl.pallas_call(
        mlp_kernel,
        out_shape=jax.ShapeDtypeStruct((1, B), jnp.float32),
        grid_spec=pltpu.PrefetchScalarGridSpec(
            num_scalar_prefetch=0,
            grid=(B // tile_b,),
            in_specs=[x_spec] + param_specs,
            out_specs=o_spec,
        ),
        compiler_params=pltpu.CompilerParams(
            dimension_semantics=("parallel",)),
    )(x_lanes, *kernel_params)

    return out.reshape(B, 1)


def net_forward_ref(x, params):
    """Pure-JAX reference (PyTorch convention: y = x @ W.T + b)."""
    h = x
    n = len(params)
    for idx, (w, b) in enumerate(params):
        h = h @ w.T + b
        if idx < n - 1:
            h = jnp.maximum(h, 0.0)
    return h


if __name__ == "__main__":
    key = jax.random.PRNGKey(0)
    kx, kp = jax.random.split(key)

    # 2 grid steps of tile_b=256 -> both v7x TensorCores get work.
    B = 512
    x = jax.random.normal(kx, (B, 1), jnp.float32)
    params = init_params(kp)

    out = net_forward(x, params, tile_b=256)
    out = jax.block_until_ready(out)

    ref = net_forward_ref(x, params)
    assert out.shape == (B, 1)
    assert jnp.allclose(out, ref, atol=1e-5, rtol=1e-5), "mismatch vs reference"

    print("KERNEL_OK")
</pallas_src>

<mosaic_0001>
module attributes {stable_mosaic.version = 11 : i64} {
  func.func @mlp_kernel(%arg0: i32, %arg1: memref<1x256xf32, #tpu.memory_space<vmem>>, %arg2: memref<32x1xf32, #tpu.memory_space<vmem>>, %arg3: memref<32x1xf32, #tpu.memory_space<vmem>>, %arg4: memref<64x32xf32, #tpu.memory_space<vmem>>, %arg5: memref<64x1xf32, #tpu.memory_space<vmem>>, %arg6: memref<128x64xf32, #tpu.memory_space<vmem>>, %arg7: memref<128x1xf32, #tpu.memory_space<vmem>>, %arg8: memref<32x128xf32, #tpu.memory_space<vmem>>, %arg9: memref<32x1xf32, #tpu.memory_space<vmem>>, %arg10: memref<16x32xf32, #tpu.memory_space<vmem>>, %arg11: memref<16x1xf32, #tpu.memory_space<vmem>>, %arg12: memref<16x1xf32, #tpu.memory_space<vmem>>, %arg13: memref<1x1xf32, #tpu.memory_space<vmem>>, %arg14: memref<1x256xf32, #tpu.memory_space<vmem>>) attributes {dimension_semantics = [#tpu.dimension_semantics<parallel>], iteration_bounds = array<i64: 2>, scalar_prefetch = 0 : i64, scratch_operands = 0 : i64, tpu.core_type = #tpu.core_type<tc>, window_params = [{transform_indices = @transform_0, window_bounds = array<i64: 1, 256>}, {pipeline_mode = #tpu.pipeline_mode<synchronous>, transform_indices = @transform_1, window_bounds = array<i64: 32, 1>}, {pipeline_mode = #tpu.pipeline_mode<synchronous>, transform_indices = @transform_2, window_bounds = array<i64: 32, 1>}, {pipeline_mode = #tpu.pipeline_mode<synchronous>, transform_indices = @transform_3, window_bounds = array<i64: 64, 32>}, {pipeline_mode = #tpu.pipeline_mode<synchronous>, transform_indices = @transform_4, window_bounds = array<i64: 64, 1>}, {pipeline_mode = #tpu.pipeline_mode<synchronous>, transform_indices = @transform_5, window_bounds = array<i64: 128, 64>}, {pipeline_mode = #tpu.pipeline_mode<synchronous>, transform_indices = @transform_6, window_bounds = array<i64: 128, 1>}, {pipeline_mode = #tpu.pipeline_mode<synchronous>, transform_indices = @transform_7, window_bounds = array<i64: 32, 128>}, {pipeline_mode = #tpu.pipeline_mode<synchronous>, transform_indices = @transform_8, window_bounds = array<i64: 32, 1>}, {pipeline_mode = #tpu.pipeline_mode<synchronous>, transform_indices = @transform_9, window_bounds = array<i64: 16, 32>}, {pipeline_mode = #tpu.pipeline_mode<synchronous>, transform_indices = @transform_10, window_bounds = array<i64: 16, 1>}, {pipeline_mode = #tpu.pipeline_mode<synchronous>, transform_indices = @transform_11, window_bounds = array<i64: 16, 1>}, {pipeline_mode = #tpu.pipeline_mode<synchronous>, transform_indices = @transform_12, window_bounds = array<i64: 1, 1>}, {transform_indices = @transform_13, window_bounds = array<i64: 1, 256>}]} {
    %c0 = arith.constant 0 : index
    %c0_0 = arith.constant 0 : index
    %0 = vector.load %arg1[%c0, %c0_0] : memref<1x256xf32, #tpu.memory_space<vmem>>, vector<1x256xf32>
    %c0_1 = arith.constant 0 : index
    %c0_2 = arith.constant 0 : index
    %1 = vector.load %arg2[%c0_1, %c0_2] : memref<32x1xf32, #tpu.memory_space<vmem>>, vector<32x1xf32>
    %2 = vector.broadcast %1 : vector<32x1xf32> to vector<32x256xf32>
    %3 = vector.broadcast %0 : vector<1x256xf32> to vector<32x256xf32>
    %4 = arith.mulf %2, %3 : vector<32x256xf32>
    %c0_3 = arith.constant 0 : index
    %c0_4 = arith.constant 0 : index
    %5 = vector.load %arg3[%c0_3, %c0_4] : memref<32x1xf32, #tpu.memory_space<vmem>>, vector<32x1xf32>
    %6 = vector.broadcast %5 : vector<32x1xf32> to vector<32x256xf32>
    %7 = arith.addf %4, %6 : vector<32x256xf32>
    %cst = arith.constant 0.000000e+00 : f32
    %8 = vector.broadcast %cst : f32 to vector<32x256xf32>
    %9 = arith.maximumf %7, %8 : vector<32x256xf32>
    %c0_5 = arith.constant 0 : index
    %c0_6 = arith.constant 0 : index
    %10 = vector.load %arg4[%c0_5, %c0_6] : memref<64x32xf32, #tpu.memory_space<vmem>>, vector<64x32xf32>
    %cst_7 = arith.constant dense<0.000000e+00> : vector<64x256xf32>
    %11 = tpu.matmul %10, %9, %cst_7 {dimension_numbers = #tpu.dot_dimension_numbers<[1], [0], [0], [1], [0, 0, 1, 1], [], []>} : vector<64x32xf32>, vector<32x256xf32>, vector<64x256xf32> -> vector<64x256xf32>
    %c0_8 = arith.constant 0 : index
    %c0_9 = arith.constant 0 : index
    %12 = vector.load %arg5[%c0_8, %c0_9] : memref<64x1xf32, #tpu.memory_space<vmem>>, vector<64x1xf32>
    %13 = vector.broadcast %12 : vector<64x1xf32> to vector<64x256xf32>
    %14 = arith.addf %11, %13 : vector<64x256xf32>
    %cst_10 = arith.constant 0.000000e+00 : f32
    %15 = vector.broadcast %cst_10 : f32 to vector<64x256xf32>
    %16 = arith.maximumf %14, %15 : vector<64x256xf32>
    %c0_11 = arith.constant 0 : index
    %c0_12 = arith.constant 0 : index
    %17 = vector.load %arg6[%c0_11, %c0_12] : memref<128x64xf32, #tpu.memory_space<vmem>>, vector<128x64xf32>
    %cst_13 = arith.constant dense<0.000000e+00> : vector<128x256xf32>
    %18 = tpu.matmul %17, %16, %cst_13 {dimension_numbers = #tpu.dot_dimension_numbers<[1], [0], [0], [1], [0, 0, 1, 1], [], []>} : vector<128x64xf32>, vector<64x256xf32>, vector<128x256xf32> -> vector<128x256xf32>
    %c0_14 = arith.constant 0 : index
    %c0_15 = arith.constant 0 : index
    %19 = vector.load %arg7[%c0_14, %c0_15] : memref<128x1xf32, #tpu.memory_space<vmem>>, vector<128x1xf32>
    %20 = vector.broadcast %19 : vector<128x1xf32> to vector<128x256xf32>
    %21 = arith.addf %18, %20 : vector<128x256xf32>
    %cst_16 = arith.constant 0.000000e+00 : f32
    %22 = vector.broadcast %cst_16 : f32 to vector<128x256xf32>
    %23 = arith.maximumf %21, %22 : vector<128x256xf32>
    %c0_17 = arith.constant 0 : index
    %c0_18 = arith.constant 0 : index
    %24 = vector.load %arg8[%c0_17, %c0_18] : memref<32x128xf32, #tpu.memory_space<vmem>>, vector<32x128xf32>
    %cst_19 = arith.constant dense<0.000000e+00> : vector<32x256xf32>
    %25 = tpu.matmul %24, %23, %cst_19 {dimension_numbers = #tpu.dot_dimension_numbers<[1], [0], [0], [1], [0, 0, 1, 1], [], []>} : vector<32x128xf32>, vector<128x256xf32>, vector<32x256xf32> -> vector<32x256xf32>
    %c0_20 = arith.constant 0 : index
    %c0_21 = arith.constant 0 : index
    %26 = vector.load %arg9[%c0_20, %c0_21] : memref<32x1xf32, #tpu.memory_space<vmem>>, vector<32x1xf32>
    %27 = vector.broadcast %26 : vector<32x1xf32> to vector<32x256xf32>
    %28 = arith.addf %25, %27 : vector<32x256xf32>
    %cst_22 = arith.constant 0.000000e+00 : f32
    %29 = vector.broadcast %cst_22 : f32 to vector<32x256xf32>
    %30 = arith.maximumf %28, %29 : vector<32x256xf32>
    %c0_23 = arith.constant 0 : index
    %c0_24 = arith.constant 0 : index
    %31 = vector.load %arg10[%c0_23, %c0_24] : memref<16x32xf32, #tpu.memory_space<vmem>>, vector<16x32xf32>
    %cst_25 = arith.constant dense<0.000000e+00> : vector<16x256xf32>
    %32 = tpu.matmul %31, %30, %cst_25 {dimension_numbers = #tpu.dot_dimension_numbers<[1], [0], [0], [1], [0, 0, 1, 1], [], []>} : vector<16x32xf32>, vector<32x256xf32>, vector<16x256xf32> -> vector<16x256xf32>
    %c0_26 = arith.constant 0 : index
    %c0_27 = arith.constant 0 : index
    %33 = vector.load %arg11[%c0_26, %c0_27] : memref<16x1xf32, #tpu.memory_space<vmem>>, vector<16x1xf32>
    %34 = vector.broadcast %33 : vector<16x1xf32> to vector<16x256xf32>
    %35 = arith.addf %32, %34 : vector<16x256xf32>
    %cst_28 = arith.constant 0.000000e+00 : f32
    %36 = vector.broadcast %cst_28 : f32 to vector<16x256xf32>
    %37 = arith.maximumf %35, %36 : vector<16x256xf32>
    %c0_29 = arith.constant 0 : index
    %c0_30 = arith.constant 0 : index
    %38 = vector.load %arg12[%c0_29, %c0_30] : memref<16x1xf32, #tpu.memory_space<vmem>>, vector<16x1xf32>
    %39 = vector.broadcast %38 : vector<16x1xf32> to vector<16x256xf32>
    %40 = arith.mulf %39, %37 : vector<16x256xf32>
    %cst_31 = arith.constant dense<0.000000e+00> : vector<256xf32>
    %41 = vector.multi_reduction <add>, %40, %cst_31 [0] : vector<16x256xf32> to vector<256xf32>
    %42 = vector.shape_cast %41 : vector<256xf32> to vector<1x256xf32>
    %c0_32 = arith.constant 0 : index
    %c0_33 = arith.constant 0 : index
    %43 = vector.load %arg13[%c0_32, %c0_33] : memref<1x1xf32, #tpu.memory_space<vmem>>, vector<1x1xf32>
    %44 = vector.broadcast %43 : vector<1x1xf32> to vector<1x256xf32>
    %45 = arith.addf %42, %44 : vector<1x256xf32>
    %c0_34 = arith.constant 0 : index
    %c0_35 = arith.constant 0 : index
    %46 = vector.load %arg14[%c0_34, %c0_35] : memref<1x256xf32, #tpu.memory_space<vmem>>, vector<1x256xf32>
    tpu.vector_store %arg14[%c0_34, %c0_35], %45 {strides = array<i32>} : memref<1x256xf32, #tpu.memory_space<vmem>>, vector<1x256xf32>,
    return
  }
  func.func @transform_0(%arg0: i32) -> (i32, i32) {
    %c0_i32 = arith.constant 0 : i32
    %c0_i32_0 = arith.constant 0 : i32
    return %c0_i32, %arg0 : i32, i32
  }
  func.func @transform_1(%arg0: i32) -> (i32, i32) {
    %c0_i32 = arith.constant 0 : i32
    %c0_i32_0 = arith.constant 0 : i32
    %c0_i32_1 = arith.constant 0 : i32
    return %c0_i32, %c0_i32_0 : i32, i32
  }
  func.func @transform_2(%arg0: i32) -> (i32, i32) {
    %c0_i32 = arith.constant 0 : i32
    %c0_i32_0 = arith.constant 0 : i32
    %c0_i32_1 = arith.constant 0 : i32
    return %c0_i32, %c0_i32_0 : i32, i32
  }
  func.func @transform_3(%arg0: i32) -> (i32, i32) {
    %c0_i32 = arith.constant 0 : i32
    %c0_i32_0 = arith.constant 0 : i32
    %c0_i32_1 = arith.constant 0 : i32
    return %c0_i32, %c0_i32_0 : i32, i32
  }
  func.func @transform_4(%arg0: i32) -> (i32, i32) {
    %c0_i32 = arith.constant 0 : i32
    %c0_i32_0 = arith.constant 0 : i32
    %c0_i32_1 = arith.constant 0 : i32
    return %c0_i32, %c0_i32_0 : i32, i32
  }
  func.func @transform_5(%arg0: i32) -> (i32, i32) {
    %c0_i32 = arith.constant 0 : i32
    %c0_i32_0 = arith.constant 0 : i32
    %c0_i32_1 = arith.constant 0 : i32
    return %c0_i32, %c0_i32_0 : i32, i32
  }
  func.func @transform_6(%arg0: i32) -> (i32, i32) {
    %c0_i32 = arith.constant 0 : i32
    %c0_i32_0 = arith.constant 0 : i32
    %c0_i32_1 = arith.constant 0 : i32
    return %c0_i32, %c0_i32_0 : i32, i32
  }
  func.func @transform_7(%arg0: i32) -> (i32, i32) {
    %c0_i32 = arith.constant 0 : i32
    %c0_i32_0 = arith.constant 0 : i32
    %c0_i32_1 = arith.constant 0 : i32
    return %c0_i32, %c0_i32_0 : i32, i32
  }
  func.func @transform_8(%arg0: i32) -> (i32, i32) {
    %c0_i32 = arith.constant 0 : i32
    %c0_i32_0 = arith.constant 0 : i32
    %c0_i32_1 = arith.constant 0 : i32
    return %c0_i32, %c0_i32_0 : i32, i32
  }
  func.func @transform_9(%arg0: i32) -> (i32, i32) {
    %c0_i32 = arith.constant 0 : i32
    %c0_i32_0 = arith.constant 0 : i32
    %c0_i32_1 = arith.constant 0 : i32
    return %c0_i32, %c0_i32_0 : i32, i32
  }
  func.func @transform_10(%arg0: i32) -> (i32, i32) {
    %c0_i32 = arith.constant 0 : i32
    %c0_i32_0 = arith.constant 0 : i32
    %c0_i32_1 = arith.constant 0 : i32
    return %c0_i32, %c0_i32_0 : i32, i32
  }
  func.func @transform_11(%arg0: i32) -> (i32, i32) {
    %c0_i32 = arith.constant 0 : i32
    %c0_i32_0 = arith.constant 0 : i32
    %c0_i32_1 = arith.constant 0 : i32
    return %c0_i32, %c0_i32_0 : i32, i32
  }
  func.func @transform_12(%arg0: i32) -> (i32, i32) {
    %c0_i32 = arith.constant 0 : i32
    %c0_i32_0 = arith.constant 0 : i32
    %c0_i32_1 = arith.constant 0 : i32
    return %c0_i32, %c0_i32_0 : i32, i32
  }
  func.func @transform_13(%arg0: i32) -> (i32, i32) {
    %c0_i32 = arith.constant 0 : i32
    %c0_i32_0 = arith.constant 0 : i32
    return %c0_i32, %arg0 : i32, i32
  }
}

</mosaic_0001>

<llo_original>
// kernel: tpu_custom_call.1
$region0: #{tpu_custom_call.1}
  #allocation0 [shape = 'u32[]', space=smem, size = 0x4, offset = 0x4, fixed_abs, tag = 'smem constant byte address 0x4 - core index']
  #allocation1 [shape = 'u32[144,128]{1,0:T(1,128)}', space=vmem, size = 0x12000, scoped, tag = 'internal scratch']
  #allocation2 [shape = 'f32[1,1]{1,0:T(1,128)S(1)}', space=vmem, size = 0x200, scoped, tag = 'scoped memory for tpu_custom_call.1']
  %s0 = inlined_call_operand.vmem [shape: f32[1,512], index: 0, kind: input, shape index: {}]
  %s1 = inlined_call_operand.vmem [shape: f32[32,1], index: 1, kind: input, shape index: {}]
  %s2 = inlined_call_operand.vmem [shape: f32[32,1], index: 2, kind: input, shape index: {}]
  %s3 = inlined_call_operand.vmem [shape: f32[64,32], index: 3, kind: input, shape index: {}]
  %s4 = inlined_call_operand.vmem [shape: f32[64,1], index: 4, kind: input, shape index: {}]
  %s5 = inlined_call_operand.vmem [shape: f32[128,64], index: 5, kind: input, shape index: {}]
  %s6 = inlined_call_operand.vmem [shape: f32[128,1], index: 6, kind: input, shape index: {}]
  %s7 = inlined_call_operand.vmem [shape: f32[32,128], index: 7, kind: input, shape index: {}]
  %s8 = inlined_call_operand.vmem [shape: f32[32,1], index: 8, kind: input, shape index: {}]
  %s9 = inlined_call_operand.vmem [shape: f32[16,32], index: 9, kind: input, shape index: {}]
  %s10 = inlined_call_operand.vmem [shape: f32[16,1], index: 10, kind: input, shape index: {}]
  %s11 = inlined_call_operand.vmem [shape: f32[16,1], index: 11, kind: input, shape index: {}]
  %s12 = inlined_call_operand.<no memory space> [shape: f32[1,1], index: 12, kind: input, shape index: {}]
  %s13 = inlined_call_operand.hbm [shape: f32[1,512], index: 13, kind: output, shape index: {}]
  %s14 = sld [smem:[#allocation0]]
  $region85: #{tpu_custom_call.1} parent=0
    _
  %s16 = ssub.s32 1, %s14
  %s17 = scalar_select 0, %s16, %s14
  %v18 = vstv %s12
  %19 = vst [vmem:[#allocation2] sm:$0x1] %v18
  $region1: #{tpu_custom_call.1} parent=0
    #allocation3 [shape = 'u8[2048]{0}', space=vmem, size = 0x800, scoped, tag = 'output window, operand 0']
    #allocation4 [shape = 's32[2]{0}', space=sflag, size = 0x8, scoped, tag = 'scoped memory for tpu_custom_call.1']
    %20 = vsyncpa [#allocation4], 0
    %s21 = scalar_lea.sflag [#allocation4], 1
    %22 = vsyncpa %s21, 0
    loop: start=0, step=1, limit=4
    $region2: #{tpu_custom_call.1} parent=1 // loop_pre_header
      _
    $region3: #{tpu_custom_call.1} parent=1 // loop_header
      %s24 = sphi 0, %s28
      %p25 = scmp.ge.s32.totalorder %s24, 4
      %s34 = sphi 0, %s36
      %s37 = sphi 0, %s34
      %s38 = sphi 0, %s37
      %s54 = sphi 0, %s38
      %s58 = sphi 0, %s58
      %s60 = sphi 0, %s58
      %s61 = sphi 0, %s60
      %s75 = sphi 0, %s61
      %s79 = sphi 0, %s79
      %s81 = sphi 0, %s79
      %s82 = sphi 0, %s81
      %s96 = sphi 0, %s82
      %s100 = sphi 0, %s100
      %s102 = sphi 0, %s100
      %s103 = sphi 0, %s102
      %s117 = sphi 0, %s103
      %s121 = sphi 0, %s121
      %s123 = sphi 0, %s121
      %s124 = sphi 0, %s123
      %s138 = sphi 0, %s124
      %s142 = sphi 0, %s142
      %s144 = sphi 0, %s142
      %s145 = sphi 0, %s144
      %s159 = sphi 0, %s145
      %s163 = sphi 0, %s163
      %s165 = sphi 0, %s163
      %s166 = sphi 0, %s165
      %s180 = sphi 0, %s166
      %s184 = sphi 0, %s184
      %s186 = sphi 0, %s184
      %s187 = sphi 0, %s186
      %s201 = sphi 0, %s187
      %s205 = sphi 0, %s205
      %s207 = sphi 0, %s205
      %s208 = sphi 0, %s207
      %s222 = sphi 0, %s208
      %s226 = sphi 0, %s226
      %s228 = sphi 0, %s226
      %s229 = sphi 0, %s228
      %s243 = sphi 0, %s229
      %s247 = sphi 0, %s247
      %s249 = sphi 0, %s247
      %s250 = sphi 0, %s249
      %s264 = sphi 0, %s250
      %s268 = sphi 0, %s268
      %s270 = sphi 0, %s268
      %s271 = sphi 0, %s270
      %s285 = sphi 0, %s271
      %s289 = sphi 0, %s289
      %s291 = sphi 0, %s289
      %s292 = sphi 0, %s291
      %s306 = sphi 0, %s292
      %s312 = sphi 0, %s314
      %s315 = sphi 0, %s312
      %s316 = sphi 0, %s315
      %s332 = sphi 0, %s316
    $region4: #{tpu_custom_call.1} parent=1 // loop_header_branch
      %27 = sbr.rel (%p25) target = $region8
    $region5: #{tpu_custom_call.1} parent=1 // loop_body
      %s29 = ssub.s32 %s24, 1
      %s30 = ssub.s32 %s24, 2
      %s31 = sadd.s32 %s24, 1
      %s32 = ssub.s32 %s24, %s31
      %p33 = scmp.eq.s32.totalorder %s32, 0
      %s35 = sadd.s32 %s34, 1
      %s36 = scalar_select %p33, %s34, %s35
      %p39 = pneg %p33
      %p40 = scmp.eq.s32.totalorder %s24, 1
      %p41 = por %p39, %p40
      %p42 = scmp.ne.s32.totalorder %s34, %s37
      %p43 = scmp.eq.s32.totalorder %s24, 0
      %p44 = por %p42, %p43
      %p45 = scmp.ne.s32.totalorder %s34, %s37
      %p46 = scmp.eq.s32.totalorder %s29, 1
      %p47 = por %p45, %p46
      %p48 = scmp.ne.s32.totalorder %s37, %s38
      %p49 = scmp.eq.s32.totalorder %s29, 0
      %p50 = por %p48, %p49
      %p51 = scmp.ne.s32.totalorder %s37, %s38
      %p52 = scmp.eq.s32.totalorder %s30, 1
      %p53 = por %p51, %p52
      %p55 = scmp.ne.s32.totalorder %s38, %s54
      %p56 = scmp.eq.s32.totalorder %s30, 0
      %p57 = por %p55, %p56
      %s59 = sadd.s32 %s58, 1
      %p62 = scmp.eq.s32.totalorder %s24, 1
      %p63 = scmp.ne.s32.totalorder %s58, %s60
      %p64 = scmp.eq.s32.totalorder %s24, 0
      %p65 = por %p63, %p64
      %p66 = scmp.ne.s32.totalorder %s58, %s60
      %p67 = scmp.eq.s32.totalorder %s29, 1
      %p68 = por %p66, %p67
      %p69 = scmp.ne.s32.totalorder %s60, %s61
      %p70 = scmp.eq.s32.totalorder %s29, 0
      %p71 = por %p69, %p70
      %p72 = scmp.ne.s32.totalorder %s60, %s61
      %p73 = scmp.eq.s32.totalorder %s30, 1
      %p74 = por %p72, %p73
      %p76 = scmp.ne.s32.totalorder %s61, %s75
      %p77 = scmp.eq.s32.totalorder %s30, 0
      %p78 = por %p76, %p77
      %s80 = sadd.s32 %s79, 1
      %p83 = scmp.eq.s32.totalorder %s24, 1
      %p84 = scmp.ne.s32.totalorder %s79, %s81
      %p85 = scmp.eq.s32.totalorder %s24, 0
      %p86 = por %p84, %p85
      %p87 = scmp.ne.s32.totalorder %s79, %s81
      %p88 = scmp.eq.s32.totalorder %s29, 1
      %p89 = por %p87, %p88
      %p90 = scmp.ne.s32.totalorder %s81, %s82
      %p91 = scmp.eq.s32.totalorder %s29, 0
      %p92 = por %p90, %p91
      %p93 = scmp.ne.s32.totalorder %s81, %s82
      %p94 = scmp.eq.s32.totalorder %s30, 1
      %p95 = por %p93, %p94
      %p97 = scmp.ne.s32.totalorder %s82, %s96
      %p98 = scmp.eq.s32.totalorder %s30, 0
      %p99 = por %p97, %p98
      %s101 = sadd.s32 %s100, 1
      %p104 = scmp.eq.s32.totalorder %s24, 1
      %p105 = scmp.ne.s32.totalorder %s100, %s102
      %p106 = scmp.eq.s32.totalorder %s24, 0
      %p107 = por %p105, %p106
      %p108 = scmp.ne.s32.totalorder %s100, %s102
      %p109 = scmp.eq.s32.totalorder %s29, 1
      %p110 = por %p108, %p109
      %p111 = scmp.ne.s32.totalorder %s102, %s103
      %p112 = scmp.eq.s32.totalorder %s29, 0
      %p113 = por %p111, %p112
      %p114 = scmp.ne.s32.totalorder %s102, %s103
      %p115 = scmp.eq.s32.totalorder %s30, 1
      %p116 = por %p114, %p115
      %p118 = scmp.ne.s32.totalorder %s103, %s117
      %p119 = scmp.eq.s32.totalorder %s30, 0
      %p120 = por %p118, %p119
      %s122 = sadd.s32 %s121, 1
      %p125 = scmp.eq.s32.totalorder %s24, 1
      %p126 = scmp.ne.s32.totalorder %s121, %s123
      %p127 = scmp.eq.s32.totalorder %s24, 0
      %p128 = por %p126, %p127
      %p129 = scmp.ne.s32.totalorder %s121, %s123
      %p130 = scmp.eq.s32.totalorder %s29, 1
      %p131 = por %p129, %p130
      %p132 = scmp.ne.s32.totalorder %s123, %s124
      %p133 = scmp.eq.s32.totalorder %s29, 0
      %p134 = por %p132, %p133
      %p135 = scmp.ne.s32.totalorder %s123, %s124
      %p136 = scmp.eq.s32.totalorder %s30, 1
      %p137 = por %p135, %p136
      %p139 = scmp.ne.s32.totalorder %s124, %s138
      %p140 = scmp.eq.s32.totalorder %s30, 0
      %p141 = por %p139, %p140
      %s143 = sadd.s32 %s142, 1
      %p146 = scmp.eq.s32.totalorder %s24, 1
      %p147 = scmp.ne.s32.totalorder %s142, %s144
      %p148 = scmp.eq.s32.totalorder %s24, 0
      %p149 = por %p147, %p148
      %p150 = scmp.ne.s32.totalorder %s142, %s144
      %p151 = scmp.eq.s32.totalorder %s29, 1
      %p152 = por %p150, %p151
      %p153 = scmp.ne.s32.totalorder %s144, %s145
      %p154 = scmp.eq.s32.totalorder %s29, 0
      %p155 = por %p153, %p154
      %p156 = scmp.ne.s32.totalorder %s144, %s145
      %p157 = scmp.eq.s32.totalorder %s30, 1
      %p158 = por %p156, %p157
      %p160 = scmp.ne.s32.totalorder %s145, %s159
      %p161 = scmp.eq.s32.totalorder %s30, 0
      %p162 = por %p160, %p161
      %s164 = sadd.s32 %s163, 1
      %p167 = scmp.eq.s32.totalorder %s24, 1
      %p168 = scmp.ne.s32.totalorder %s163, %s165
      %p169 = scmp.eq.s32.totalorder %s24, 0
      %p170 = por %p168, %p169
      %p171 = scmp.ne.s32.totalorder %s163, %s165
      %p172 = scmp.eq.s32.totalorder %s29, 1
      %p173 = por %p171, %p172
      %p174 = scmp.ne.s32.totalorder %s165, %s166
      %p175 = scmp.eq.s32.totalorder %s29, 0
      %p176 = por %p174, %p175
      %p177 = scmp.ne.s32.totalorder %s165, %s166
      %p178 = scmp.eq.s32.totalorder %s30, 1
      %p179 = por %p177, %p178
      %p181 = scmp.ne.s32.totalorder %s166, %s180
      %p182 = scmp.eq.s32.totalorder %s30, 0
      %p183 = por %p181, %p182
      %s185 = sadd.s32 %s184, 1
      %p188 = scmp.eq.s32.totalorder %s24, 1
      %p189 = scmp.ne.s32.totalorder %s184, %s186
      %p190 = scmp.eq.s32.totalorder %s24, 0
      %p191 = por %p189, %p190
      %p192 = scmp.ne.s32.totalorder %s184, %s186
      %p193 = scmp.eq.s32.totalorder %s29, 1
      %p194 = por %p192, %p193
      %p195 = scmp.ne.s32.totalorder %s186, %s187
      %p196 = scmp.eq.s32.totalorder %s29, 0
      %p197 = por %p195, %p196
      %p198 = scmp.ne.s32.totalorder %s186, %s187
      %p199 = scmp.eq.s32.totalorder %s30, 1
      %p200 = por %p198, %p199
      %p202 = scmp.ne.s32.totalorder %s187, %s201
      %p203 = scmp.eq.s32.totalorder %s30, 0
      %p204 = por %p202, %p203
      %s206 = sadd.s32 %s205, 1
      %p209 = scmp.eq.s32.totalorder %s24, 1
      %p210 = scmp.ne.s32.totalorder %s205, %s207
      %p211 = scmp.eq.s32.totalorder %s24, 0
      %p212 = por %p210, %p211
      %p213 = scmp.ne.s32.totalorder %s205, %s207
      %p214 = scmp.eq.s32.totalorder %s29, 1
      %p215 = por %p213, %p214
      %p216 = scmp.ne.s32.totalorder %s207, %s208
      %p217 = scmp.eq.s32.totalorder %s29, 0
      %p218 = por %p216, %p217
      %p219 = scmp.ne.s32.totalorder %s207, %s208
      %p220 = scmp.eq.s32.totalorder %s30, 1
      %p221 = por %p219, %p220
      %p223 = scmp.ne.s32.totalorder %s208, %s222
      %p224 = scmp.eq.s32.totalorder %s30, 0
      %p225 = por %p223, %p224
      %s227 = sadd.s32 %s226, 1
      %p230 = scmp.eq.s32.totalorder %s24, 1
      %p231 = scmp.ne.s32.totalorder %s226, %s228
      %p232 = scmp.eq.s32.totalorder %s24, 0
      %p233 = por %p231, %p232
      %p234 = scmp.ne.s32.totalorder %s226, %s228
      %p235 = scmp.eq.s32.totalorder %s29, 1
      %p236 = por %p234, %p235
      %p237 = scmp.ne.s32.totalorder %s228, %s229
      %p238 = scmp.eq.s32.totalorder %s29, 0
      %p239 = por %p237, %p238
      %p240 = scmp.ne.s32.totalorder %s228, %s229
      %p241 = scmp.eq.s32.totalorder %s30, 1
      %p242 = por %p240, %p241
      %p244 = scmp.ne.s32.totalorder %s229, %s243
      %p245 = scmp.eq.s32.totalorder %s30, 0
      %p246 = por %p244, %p245
      %s248 = sadd.s32 %s247, 1
      %p251 = scmp.eq.s32.totalorder %s24, 1
      %p252 = scmp.ne.s32.totalorder %s247, %s249
      %p253 = scmp.eq.s32.totalorder %s24, 0
      %p254 = por %p252, %p253
      %p255 = scmp.ne.s32.totalorder %s247, %s249
      %p256 = scmp.eq.s32.totalorder %s29, 1
      %p257 = por %p255, %p256
      %p258 = scmp.ne.s32.totalorder %s249, %s250
      %p259 = scmp.eq.s32.totalorder %s29, 0
      %p260 = por %p258, %p259
      %p261 = scmp.ne.s32.totalorder %s249, %s250
      %p262 = scmp.eq.s32.totalorder %s30, 1
      %p263 = por %p261, %p262
      %p265 = scmp.ne.s32.totalorder %s250, %s264
      %p266 = scmp.eq.s32.totalorder %s30, 0
      %p267 = por %p265, %p266
      %s269 = sadd.s32 %s268, 1
      %p272 = scmp.eq.s32.totalorder %s24, 1
      %p273 = scmp.ne.s32.totalorder %s268, %s270
      %p274 = scmp.eq.s32.totalorder %s24, 0
      %p275 = por %p273, %p274
      %p276 = scmp.ne.s32.totalorder %s268, %s270
      %p277 = scmp.eq.s32.totalorder %s29, 1
      %p278 = por %p276, %p277
      %p279 = scmp.ne.s32.totalorder %s270, %s271
      %p280 = scmp.eq.s32.totalorder %s29, 0
      %p281 = por %p279, %p280
      %p282 = scmp.ne.s32.totalorder %s270, %s271
      %p283 = scmp.eq.s32.totalorder %s30, 1
      %p284 = por %p282, %p283
      %p286 = scmp.ne.s32.totalorder %s271, %s285
      %p287 = scmp.eq.s32.totalorder %s30, 0
      %p288 = por %p286, %p287
      %s290 = sadd.s32 %s289, 1
      %p293 = scmp.eq.s32.totalorder %s24, 1
      %p294 = scmp.ne.s32.totalorder %s289, %s291
      %p295 = scmp.eq.s32.totalorder %s24, 0
      %p296 = por %p294, %p295
      %p297 = scmp.ne.s32.totalorder %s289, %s291
      %p298 = scmp.eq.s32.totalorder %s29, 1
      %p299 = por %p297, %p298
      %p300 = scmp.ne.s32.totalorder %s291, %s292
      %p301 = scmp.eq.s32.totalorder %s29, 0
      %p302 = por %p300, %p301
      %p303 = scmp.ne.s32.totalorder %s291, %s292
      %p304 = scmp.eq.s32.totalorder %s30, 1
      %p305 = por %p303, %p304
      %p307 = scmp.ne.s32.totalorder %s292, %s306
      %p308 = scmp.eq.s32.totalorder %s30, 0
      %p309 = por %p307, %p308
      %s310 = ssub.s32 %s24, %s31
      %p311 = scmp.eq.s32.totalorder %s310, 0
      %s313 = sadd.s32 %s312, 1
      %s314 = scalar_select %p311, %s312, %s313
      %p317 = pneg %p311
      %p318 = scmp.eq.s32.totalorder %s24, 1
      %p319 = por %p317, %p318
      %p320 = scmp.ne.s32.totalorder %s312, %s315
      %p321 = scmp.eq.s32.totalorder %s24, 0
      %p322 = por %p320, %p321
      %p323 = scmp.ne.s32.totalorder %s312, %s315
      %p324 = scmp.eq.s32.totalorder %s29, 1
      %p325 = por %p323, %p324
      %p326 = scmp.ne.s32.totalorder %s315, %s316
      %p327 = scmp.eq.s32.totalorder %s29, 0
      %p328 = por %p326, %p327
      %p329 = scmp.ne.s32.totalorder %s315, %s316
      %p330 = scmp.eq.s32.totalorder %s30, 1
      %p331 = por %p329, %p330
      %p333 = scmp.ne.s32.totalorder %s316, %s332
      %p334 = scmp.eq.s32.totalorder %s30, 0
      %p335 = por %p333, %p334
      %p336 = scmp.le.s32.totalorder 1, %s24
      %p337 = scmp.lt.s32.totalorder %s24, 3
      %p338 = pnand %p336, %p337
      %p339 = pneg %p338
      // Predicated region
      $region9: #{tpu_custom_call.1} parent=5 // pred_check
        _
      $region10: #{tpu_custom_call.1} parent=5 // pred_check_branch
        %341 = sbr.rel (%p338) target = $region12
      $region11: #{tpu_custom_call.1} parent=5 // pred_region
        %s342 = ssub.s32 %s24, 1
        // Predicated region
        $region13: #{tpu_custom_call.1} parent=11 // pred_check
          %p343 = pneg %p71
        $region14: #{tpu_custom_call.1} parent=11 // pred_check_branch
          %345 = sbr.rel (%p343) target = $region16
        $region15: #{tpu_custom_call.1} parent=11 // pred_region
          _
        $region16: #{tpu_custom_call.1} parent=11 // pred_fallthru
          _
        // Predicated region
        $region17: #{tpu_custom_call.1} parent=11 // pred_check
          %p346 = pneg %p92
        $region18: #{tpu_custom_call.1} parent=11 // pred_check_branch
          %348 = sbr.rel (%p346) target = $region20
        $region19: #{tpu_custom_call.1} parent=11 // pred_region
          _
        $region20: #{tpu_custom_call.1} parent=11 // pred_fallthru
          _
        // Predicated region
        $region21: #{tpu_custom_call.1} parent=11 // pred_check
          %p349 = pneg %p113
        $region22: #{tpu_custom_call.1} parent=11 // pred_check_branch
          %351 = sbr.rel (%p349) target = $region24
        $region23: #{tpu_custom_call.1} parent=11 // pred_region
          _
        $region24: #{tpu_custom_call.1} parent=11 // pred_fallthru
          _
        // Predicated region
        $region25: #{tpu_custom_call.1} parent=11 // pred_check
          %p352 = pneg %p134
        $region26: #{tpu_custom_call.1} parent=11 // pred_check_branch
          %354 = sbr.rel (%p352) target = $region28
        $region27: #{tpu_custom_call.1} parent=11 // pred_region
          _
        $region28: #{tpu_custom_call.1} parent=11 // pred_fallthru
          _
        // Predicated region
        $region29: #{tpu_custom_call.1} parent=11 // pred_check
          %p355 = pneg %p155
        $region30: #{tpu_custom_call.1} parent=11 // pred_check_branch
          %357 = sbr.rel (%p355) target = $region32
        $region31: #{tpu_custom_call.1} parent=11 // pred_region
          _
        $region32: #{tpu_custom_call.1} parent=11 // pred_fallthru
          _
        // Predicated region
        $region33: #{tpu_custom_call.1} parent=11 // pred_check
          %p358 = pneg %p176
        $region34: #{tpu_custom_call.1} parent=11 // pred_check_branch
          %360 = sbr.rel (%p358) target = $region36
        $region35: #{tpu_custom_call.1} parent=11 // pred_region
          _
        $region36: #{tpu_custom_call.1} parent=11 // pred_fallthru
          _
        // Predicated region
        $region37: #{tpu_custom_call.1} parent=11 // pred_check
          %p361 = pneg %p197
        $region38: #{tpu_custom_call.1} parent=11 // pred_check_branch
          %363 = sbr.rel (%p361) target = $region40
        $region39: #{tpu_custom_call.1} parent=11 // pred_region
          _
        $region40: #{tpu_custom_call.1} parent=11 // pred_fallthru
          _
        // Predicated region
        $region41: #{tpu_custom_call.1} parent=11 // pred_check
          %p364 = pneg %p218
        $region42: #{tpu_custom_call.1} parent=11 // pred_check_branch
          %366 = sbr.rel (%p364) target = $region44
        $region43: #{tpu_custom_call.1} parent=11 // pred_region
          _
        $region44: #{tpu_custom_call.1} parent=11 // pred_fallthru
          _
        // Predicated region
        $region45: #{tpu_custom_call.1} parent=11 // pred_check
          %p367 = pneg %p239
        $region46: #{tpu_custom_call.1} parent=11 // pred_check_branch
          %369 = sbr.rel (%p367) target = $region48
        $region47: #{tpu_custom_call.1} parent=11 // pred_region
          _
        $region48: #{tpu_custom_call.1} parent=11 // pred_fallthru
          _
        // Predicated region
        $region49: #{tpu_custom_call.1} parent=11 // pred_check
          %p370 = pneg %p260
        $region50: #{tpu_custom_call.1} parent=11 // pred_check_branch
          %372 = sbr.rel (%p370) target = $region52
        $region51: #{tpu_custom_call.1} parent=11 // pred_region
          _
        $region52: #{tpu_custom_call.1} parent=11 // pred_fallthru
          _
        // Predicated region
        $region53: #{tpu_custom_call.1} parent=11 // pred_check
          %p373 = pneg %p281
        $region54: #{tpu_custom_call.1} parent=11 // pred_check_branch
          %375 = sbr.rel (%p373) target = $region56
        $region55: #{tpu_custom_call.1} parent=11 // pred_region
          _
        $region56: #{tpu_custom_call.1} parent=11 // pred_fallthru
          _
        // Predicated region
        $region57: #{tpu_custom_call.1} parent=11 // pred_check
          %p376 = pneg %p302
        $region58: #{tpu_custom_call.1} parent=11 // pred_check_branch
          %378 = sbr.rel (%p376) target = $region60
        $region59: #{tpu_custom_call.1} parent=11 // pred_region
          _
        $region60: #{tpu_custom_call.1} parent=11 // pred_fallthru
          _
      $region12: #{tpu_custom_call.1} parent=5 // pred_fallthru
        _
      %p379 = scmp.lt.s32.totalorder %s24, 2
      // Predicated region
      $region61: #{tpu_custom_call.1} parent=5 // pred_check
        %p380 = pneg %p379
      $region62: #{tpu_custom_call.1} parent=5 // pred_check_branch
        %382 = sbr.rel (%p380) target = $region64
      $region63: #{tpu_custom_call.1} parent=5 // pred_region
        // Predicated region
        $region65: #{tpu_custom_call.1} parent=63 // pred_check
          %p383 = pneg %p44
        $region66: #{tpu_custom_call.1} parent=63 // pred_check_branch
          %385 = sbr.rel (%p383) target = $region68
        $region67: #{tpu_custom_call.1} parent=63 // pred_region
          %s386 = smul.u32 2, %s24
          %p387 = scmp.lt.s32.totalorder %s386, 3
          %s388 = scalar_select %p387, %s386, 3
          %s389 = scalar_lea.vmem %s0, %s388
          %s390 = smul.u32 2, %s24
        $region68: #{tpu_custom_call.1} parent=63 // pred_fallthru
          _
      $region64: #{tpu_custom_call.1} parent=5 // pred_fallthru
        _
      %p391 = scmp.le.s32.totalorder 1, %s24
      %p392 = scmp.lt.s32.totalorder %s24, 3
      %p393 = pnand %p391, %p392
      %p394 = pneg %p393
      // Predicated region
      $region69: #{tpu_custom_call.1} parent=5 // pred_check
        _
      $region70: #{tpu_custom_call.1} parent=5 // pred_check_branch
        %396 = sbr.rel (%p393) target = $region72
      $region71: #{tpu_custom_call.1} parent=5 // pred_region
        %s397 = ssub.s32 %s24, 1
        %s398 = smul.u32 2, %s29
        %p399 = scmp.lt.s32.totalorder %s398, 3
        %s400 = scalar_select %p399, %s398, 3
        %s401 = scalar_lea.vmem %s0, %s400
        %p402 = pneg %p50
        %p403 = pneg %p47
        %p404 = pneg %p71
        %p405 = pneg %p68
        %p406 = pneg %p92
        %p407 = pneg %p89
        %p408 = pneg %p113
        %p409 = pneg %p110
        %p410 = pneg %p134
        %p411 = pneg %p131
        %p412 = pneg %p155
        %p413 = pneg %p152
        %p414 = pneg %p176
        %p415 = pneg %p173
        %p416 = pneg %p197
        %p417 = pneg %p194
        %p418 = pneg %p218
        %p419 = pneg %p215
        %p420 = pneg %p239
        %p421 = pneg %p236
        %p422 = pneg %p260
        %p423 = pneg %p257
        %p424 = pneg %p281
        %p425 = pneg %p278
        %p426 = pneg %p302
        %p427 = pneg %p299
        %p428 = pneg %p328
        %p429 = pneg %p325
        %s430 = sand.u32 %s315, 1
        %s431 = scalar_lea.sflag [#allocation4], %s430
        %s432 = sand.u32 %s315, 1
        %s433 = smul.addr %s432, 2
        %s434 = scalar_lea.vmem [#allocation3], %s433
        %s435 = smul.u32 2, %s29
        %p436 = scmp.lt.s32.totalorder %s435, 3
        %s437 = scalar_select %p436, %s435, 3
        %s438 = scalar_lea.vmem %s0, %s437
        %s439 = smul.u32 2, %s29
        %s440 = smul.u32 2, %s29
        %v441 = vld [vmem:[%s438] sm:$0x3]
        %v442 = vld [vmem:[%s1] sm:$0xff]
        %v443 = vld [vmem:[%s1 + $0x8] sm:$0xff]
        %v444 = vld [vmem:[%s1 + $0x10] sm:$0xff]
        %v445 = vld [vmem:[%s1 + $0x18] sm:$0xff]
        %447 = vset.pattern.permute.xlu0 0
        %448 = vperm.xlu0 %447, %v442
        %v449 = vpop.permute.xlu0 %448
        %452 = vset.pattern.permute.xlu0 0
        %453 = vperm.xlu0 %452, %v443
        %v454 = vpop.permute.xlu0 %453
        %457 = vset.pattern.permute.xlu0 0
        %458 = vperm.xlu0 %457, %v444
        %v459 = vpop.permute.xlu0 %458
        %462 = vset.pattern.permute.xlu0 0
        %463 = vperm.xlu0 %462, %v445
        %v464 = vpop.permute.xlu0 %463
        %v467 = vlaneseq
        %v468 = vshrl.u32 %v467, 7
        %v469 = vsub.s32 0, %v468
        %v470 = vrot.slane %v441, %v469
        %v471 = vlaneseq
        %v472 = vshrl.u32 %v471, 7
        %v473 = vsub.s32 1, %v472
        %v474 = vrot.slane %v441, %v473
        %v477 = vmul.f32 %v449, %v470
        %v478 = vmul.f32 %v449, %v474
        %v479 = vmul.f32 %v454, %v470
        %v480 = vmul.f32 %v454, %v474
        %v481 = vmul.f32 %v459, %v470
        %v482 = vmul.f32 %v459, %v474
        %v483 = vmul.f32 %v464, %v470
        %v484 = vmul.f32 %v464, %v474
        %v485 = vld [vmem:[%s2] sm:$0xff]
        %v486 = vld [vmem:[%s2 + $0x8] sm:$0xff]
        %v487 = vld [vmem:[%s2 + $0x10] sm:$0xff]
        %v488 = vld [vmem:[%s2 + $0x18] sm:$0xff]
        %490 = vset.pattern.permute.xlu0 0
        %491 = vperm.xlu0 %490, %v485
        %v492 = vpop.permute.xlu0 %491
        %495 = vset.pattern.permute.xlu0 0
        %496 = vperm.xlu0 %495, %v486
        %v497 = vpop.permute.xlu0 %496
        %500 = vset.pattern.permute.xlu0 0
        %501 = vperm.xlu0 %500, %v487
        %v502 = vpop.permute.xlu0 %501
        %505 = vset.pattern.permute.xlu0 0
        %506 = vperm.xlu0 %505, %v488
        %v507 = vpop.permute.xlu0 %506
        %v509 = vadd.f32 %v477, %v492
        %v510 = vadd.f32 %v478, %v492
        %v511 = vadd.f32 %v479, %v497
        %v512 = vadd.f32 %v480, %v497
        %v513 = vadd.f32 %v481, %v502
        %v514 = vadd.f32 %v482, %v502
        %v515 = vadd.f32 %v483, %v507
        %v516 = vadd.f32 %v484, %v507
        %v517 = vmax.f32 %v509, 0.0
        %v518 = vmax.f32 %v510, 0.0
        %v519 = vmax.f32 %v511, 0.0
        %v520 = vmax.f32 %v512, 0.0
        %v521 = vmax.f32 %v513, 0.0
        %v522 = vmax.f32 %v514, 0.0
        %v523 = vmax.f32 %v515, 0.0
        %v524 = vmax.f32 %v516, 0.0
        %v525 = vld [vmem:[%s3] sm:$0xff]
        %v526 = vld [vmem:[%s3 + $0x8] sm:$0xff]
        %v527 = vld [vmem:[%s3 + $0x10] sm:$0xff]
        %v528 = vld [vmem:[%s3 + $0x18] sm:$0xff]
        %v529 = vld [vmem:[%s3 + $0x20] sm:$0xff]
        %v530 = vld [vmem:[%s3 + $0x28] sm:$0xff]
        %v531 = vld [vmem:[%s3 + $0x30] sm:$0xff]
        %v532 = vld [vmem:[%s3 + $0x38] sm:$0xff]
        %v533 = vld [vmem:[%s4] sm:$0xff]
        %v534 = vld [vmem:[%s4 + $0x8] sm:$0xff]
        %v535 = vld [vmem:[%s4 + $0x10] sm:$0xff]
        %v536 = vld [vmem:[%s4 + $0x18] sm:$0xff]
        %v537 = vld [vmem:[%s4 + $0x20] sm:$0xff]
        %v538 = vld [vmem:[%s4 + $0x28] sm:$0xff]
        %v539 = vld [vmem:[%s4 + $0x30] sm:$0xff]
        %v540 = vld [vmem:[%s4 + $0x38] sm:$0xff]
        %542 = vset.pattern.permute.xlu0 0
        %543 = vperm.xlu0 %542, %v533
        %v544 = vpop.permute.xlu0 %543
        %547 = vset.pattern.permute.xlu0 0
        %548 = vperm.xlu0 %547, %v534
        %v549 = vpop.permute.xlu0 %548
        %552 = vset.pattern.permute.xlu0 0
        %553 = vperm.xlu0 %552, %v535
        %v554 = vpop.permute.xlu0 %553
        %557 = vset.pattern.permute.xlu0 0
        %558 = vperm.xlu0 %557, %v536
        %v559 = vpop.permute.xlu0 %558
        %562 = vset.pattern.permute.xlu0 0
        %563 = vperm.xlu0 %562, %v537
        %v564 = vpop.permute.xlu0 %563
        %567 = vset.pattern.permute.xlu0 0
        %568 = vperm.xlu0 %567, %v538
        %v569 = vpop.permute.xlu0 %568
        %572 = vset.pattern.permute.xlu0 0
        %573 = vperm.xlu0 %572, %v539
        %v574 = vpop.permute.xlu0 %573
        %577 = vset.pattern.permute.xlu0 0
        %578 = vperm.xlu0 %577, %v540
        %v579 = vpop.permute.xlu0 %578
        %vm581 = vcmask 261120
        %v583 = vsel %vm581, %v525, 0
        %v586 = vsel %vm581, %v526, 0
        %v589 = vsel %vm581, %v527, 0
        %v592 = vsel %vm581, %v528, 0
        %v595 = vsel %vm581, %v529, 0
        %v598 = vsel %vm581, %v530, 0
        %v601 = vsel %vm581, %v531, 0
        %v604 = vsel %vm581, %v532, 0
        %606 = vmatprep.subr.mxu0 %v518
        %607 = vmatpush1.msra.mxu0 %v517
        %608 = vmatprep.subr.mxu0 %v520
        %609 = vmatpush1.msra.mxu0 %v519
        %610 = vmatprep.subr.mxu0 %v522
        %611 = vmatpush1.msra.mxu0 %v521
        %612 = vmatprep.subr.mxu0 %v524
        %613 = vmatpush1.msra.mxu0 %v523
        %614 = vmatprep.subr.mxu0 0.0
        %615 = vmatpush1.msra.mxu0 0.0
        %616 = vmatprep.subr.mxu0 0.0
        %617 = vmatpush1.msra.mxu0 0.0
        %618 = vmatprep.subr.mxu0 0.0
        %619 = vmatpush1.msra.mxu0 0.0
        %620 = vmatprep.subr.mxu0 0.0
        %621 = vmatpush1.msra.mxu0 0.0
        %622 = vmatprep.subr.mxu0 0.0
        %623 = vmatpush1.msra.mxu0 0.0
        %624 = vmatprep.subr.mxu0 0.0
        %625 = vmatpush1.msra.mxu0 0.0
        %626 = vmatprep.subr.mxu0 0.0
        %627 = vmatpush1.msra.mxu0 0.0
        %628 = vmatprep.subr.mxu0 0.0
        %629 = vmatpush1.msra.mxu0 0.0
        %630 = vmatprep.subr.mxu0 0.0
        %631 = vmatpush1.msra.mxu0 0.0
        %632 = vmatprep.subr.mxu0 0.0
        %633 = vmatpush1.msra.mxu0 0.0
        %634 = vmatprep.subr.mxu0 0.0
        %635 = vmatpush1.msra.mxu0 0.0
        %636 = vmatprep.subr.mxu0 0.0
        %637 = vmatpush1.msra.mxu0 0.0
        %638 = vmatprep.subr.mxu0 0.0
        %639 = vmatpush1.msra.mxu0 0.0
        %640 = vmatprep.subr.mxu0 0.0
        %641 = vmatpush1.msra.mxu0 0.0
        %642 = vmatprep.subr.mxu0 0.0
        %643 = vmatpush1.msra.mxu0 0.0
        %644 = vmatprep.subr.mxu0 0.0
        %645 = vmatpush1.msra.mxu0 0.0
        %646 = vmatprep.subr.mxu0 0.0
        %647 = vmatpush1.msra.mxu0 0.0
        %648 = vmatprep.subr.mxu0 0.0
        %649 = vmatpush1.msra.mxu0 0.0
        %650 = vmatprep.subr.mxu0 0.0
        %651 = vmatpush1.msra.mxu0 0.0
        %652 = vmatprep.subr.mxu0 0.0
        %653 = vmatpush1.msra.mxu0 0.0
        %654 = vmatprep.subr.mxu0 0.0
        %655 = vmatpush1.msra.mxu0 0.0
        %656 = vmatprep.subr.mxu0 0.0
        %657 = vmatpush1.msra.mxu0 0.0
        %658 = vmatprep.subr.mxu0 0.0
        %659 = vmatpush1.msra.mxu0 0.0
        %660 = vmatprep.subr.mxu0 0.0
        %661 = vmatpush1.msra.mxu0 0.0
        %662 = vmatprep.subr.mxu0 0.0
        %663 = vmatpush1.msra.mxu0 0.0
        %664 = vmatprep.subr.mxu0 0.0
        %665 = vmatpush1.msra.mxu0 0.0
        %666 = vmatprep.subr.mxu0 0.0
        %667 = vmatpush1.msra.mxu0 0.0
        %668 = vmatprep.subr.mxu0 0.0
        %669 = vmatpush1.msra.mxu0 0.0
        %670 = vmatprep.mubr.f32.mxu0 0.0
        %671 = vmatmul.mubr.f32.gmra.mrb[0].mxu0 %v583
        %v672 = vpop.f32.mrb[0].mxu0
        %v673 = vadd.f32 %v544, %v672
        %v674 = vpop.f32.mrb[0].mxu0
        %v675 = vadd.f32 %v544, %v674
        %676 = vmatprep.mubr.f32.mxu0 0.0
        %677 = vmatmul.mubr.f32.gmra.mrb[0].mxu0 %v586
        %v678 = vpop.f32.mrb[0].mxu0
        %v679 = vadd.f32 %v549, %v678
        %v680 = vpop.f32.mrb[0].mxu0
        %v681 = vadd.f32 %v549, %v680
        %682 = vmatprep.mubr.f32.mxu0 0.0
        %683 = vmatmul.mubr.f32.gmra.mrb[0].mxu0 %v589
        %v684 = vpop.f32.mrb[0].mxu0
        %v685 = vadd.f32 %v554, %v684
        %v686 = vpop.f32.mrb[0].mxu0
        %v687 = vadd.f32 %v554, %v686
        %688 = vmatprep.mubr.f32.mxu0 0.0
        %689 = vmatmul.mubr.f32.gmra.mrb[0].mxu0 %v592
        %v690 = vpop.f32.mrb[0].mxu0
        %v691 = vadd.f32 %v559, %v690
        %v692 = vpop.f32.mrb[0].mxu0
        %v693 = vadd.f32 %v559, %v692
        %694 = vmatprep.mubr.f32.mxu0 0.0
        %695 = vmatmul.mubr.f32.gmra.mrb[0].mxu0 %v595
        %v696 = vpop.f32.mrb[0].mxu0
        %v697 = vadd.f32 %v564, %v696
        %v698 = vpop.f32.mrb[0].mxu0
        %v699 = vadd.f32 %v564, %v698
        %700 = vmatprep.mubr.f32.mxu0 0.0
        %701 = vmatmul.mubr.f32.gmra.mrb[0].mxu0 %v598
        %v702 = vpop.f32.mrb[0].mxu0
        %v703 = vadd.f32 %v569, %v702
        %v704 = vpop.f32.mrb[0].mxu0
        %v705 = vadd.f32 %v569, %v704
        %706 = vmatprep.mubr.f32.mxu0 0.0
        %707 = vmatmul.mubr.f32.gmra.mrb[0].mxu0 %v601
        %v708 = vpop.f32.mrb[0].mxu0
        %v709 = vadd.f32 %v574, %v708
        %v710 = vpop.f32.mrb[0].mxu0
        %v711 = vadd.f32 %v574, %v710
        %712 = vmatprep.mubr.f32.mxu0 0.0
        %713 = vmatmul.mubr.f32.gmra.mrb[0].mxu0 %v604
        %v714 = vpop.f32.mrb[0].mxu0
        %v715 = vadd.f32 %v579, %v714
        %v716 = vpop.f32.mrb[0].mxu0
        %v717 = vadd.f32 %v579, %v716
        %718 = vdwg.mxu0
        %v719 = vmax.f32 %v673, 0.0
        %v720 = vmax.f32 %v675, 0.0
        %v721 = vmax.f32 %v679, 0.0
        %v722 = vmax.f32 %v681, 0.0
        %v723 = vmax.f32 %v685, 0.0
        %v724 = vmax.f32 %v687, 0.0
        %v725 = vmax.f32 %v691, 0.0
        %v726 = vmax.f32 %v693, 0.0
        %v727 = vmax.f32 %v697, 0.0
        %v728 = vmax.f32 %v699, 0.0
        %v729 = vmax.f32 %v703, 0.0
        %v730 = vmax.f32 %v705, 0.0
        %v731 = vmax.f32 %v709, 0.0
        %v732 = vmax.f32 %v711, 0.0
        %v733 = vmax.f32 %v715, 0.0
        %v734 = vmax.f32 %v717, 0.0
        %v735 = vld [vmem:[%s5] sm:$0xff]
        %v736 = vld [vmem:[%s5 + $0x8] sm:$0xff]
        %v737 = vld [vmem:[%s5 + $0x10] sm:$0xff]
        %v738 = vld [vmem:[%s5 + $0x18] sm:$0xff]
        %v739 = vld [vmem:[%s5 + $0x20] sm:$0xff]
        %v740 = vld [vmem:[%s5 + $0x28] sm:$0xff]
        %v741 = vld [vmem:[%s5 + $0x30] sm:$0xff]
        %v742 = vld [vmem:[%s5 + $0x38] sm:$0xff]
        %v743 = vld [vmem:[%s5 + $0x40] sm:$0xff]
        %v744 = vld [vmem:[%s5 + $0x48] sm:$0xff]
        %v745 = vld [vmem:[%s5 + $0x50] sm:$0xff]
        %v746 = vld [vmem:[%s5 + $0x58] sm:$0xff]
        %v747 = vld [vmem:[%s5 + $0x60] sm:$0xff]
        %v748 = vld [vmem:[%s5 + $0x68] sm:$0xff]
        %v749 = vld [vmem:[%s5 + $0x70] sm:$0xff]
        %v750 = vld [vmem:[%s5 + $0x78] sm:$0xff]
        %v751 = vld [vmem:[%s6] sm:$0xff]
        %v752 = vld [vmem:[%s6 + $0x8] sm:$0xff]
        %v753 = vld [vmem:[%s6 + $0x10] sm:$0xff]
        %v754 = vld [vmem:[%s6 + $0x18] sm:$0xff]
        %v755 = vld [vmem:[%s6 + $0x20] sm:$0xff]
        %v756 = vld [vmem:[%s6 + $0x28] sm:$0xff]
        %v757 = vld [vmem:[%s6 + $0x30] sm:$0xff]
        %v758 = vld [vmem:[%s6 + $0x38] sm:$0xff]
        %v759 = vld [vmem:[%s6 + $0x40] sm:$0xff]
        %v760 = vld [vmem:[%s6 + $0x48] sm:$0xff]
        %v761 = vld [vmem:[%s6 + $0x50] sm:$0xff]
        %v762 = vld [vmem:[%s6 + $0x58] sm:$0xff]
        %v763 = vld [vmem:[%s6 + $0x60] sm:$0xff]
        %v764 = vld [vmem:[%s6 + $0x68] sm:$0xff]
        %v765 = vld [vmem:[%s6 + $0x70] sm:$0xff]
        %v766 = vld [vmem:[%s6 + $0x78] sm:$0xff]
        %768 = vset.pattern.permute.xlu0 0
        %769 = vperm.xlu0 %768, %v751
        %v770 = vpop.permute.xlu0 %769
        %773 = vset.pattern.permute.xlu0 0
        %774 = vperm.xlu0 %773, %v752
        %v775 = vpop.permute.xlu0 %774
        %778 = vset.pattern.permute.xlu0 0
        %779 = vperm.xlu0 %778, %v753
        %v780 = vpop.permute.xlu0 %779
        %783 = vset.pattern.permute.xlu0 0
        %784 = vperm.xlu0 %783, %v754
        %v785 = vpop.permute.xlu0 %784
        %788 = vset.pattern.permute.xlu0 0
        %789 = vperm.xlu0 %788, %v755
        %v790 = vpop.permute.xlu0 %789
        %793 = vset.pattern.permute.xlu0 0
        %794 = vperm.xlu0 %793, %v756
        %v795 = vpop.permute.xlu0 %794
        %798 = vset.pattern.permute.xlu0 0
        %799 = vperm.xlu0 %798, %v757
        %v800 = vpop.permute.xlu0 %799
        %803 = vset.pattern.permute.xlu0 0
        %804 = vperm.xlu0 %803, %v758
        %v805 = vpop.permute.xlu0 %804
        %808 = vset.pattern.permute.xlu0 0
        %809 = vperm.xlu0 %808, %v759
        %v810 = vpop.permute.xlu0 %809
        %813 = vset.pattern.permute.xlu0 0
        %814 = vperm.xlu0 %813, %v760
        %v815 = vpop.permute.xlu0 %814
        %818 = vset.pattern.permute.xlu0 0
        %819 = vperm.xlu0 %818, %v761
        %v820 = vpop.permute.xlu0 %819
        %823 = vset.pattern.permute.xlu0 0
        %824 = vperm.xlu0 %823, %v762
        %v825 = vpop.permute.xlu0 %824
        %828 = vset.pattern.permute.xlu0 0
        %829 = vperm.xlu0 %828, %v763
        %v830 = vpop.permute.xlu0 %829
        %833 = vset.pattern.permute.xlu0 0
        %834 = vperm.xlu0 %833, %v764
        %v835 = vpop.permute.xlu0 %834
        %838 = vset.pattern.permute.xlu0 0
        %839 = vperm.xlu0 %838, %v765
        %v840 = vpop.permute.xlu0 %839
        %843 = vset.pattern.permute.xlu0 0
        %844 = vperm.xlu0 %843, %v766
        %v845 = vpop.permute.xlu0 %844
        %vm847 = vcmask 523264
        %v849 = vsel %vm847, %v735, 0
        %v852 = vsel %vm847, %v736, 0
        %v855 = vsel %vm847, %v737, 0
        %v858 = vsel %vm847, %v738, 0
        %v861 = vsel %vm847, %v739, 0
        %v864 = vsel %vm847, %v740, 0
        %v867 = vsel %vm847, %v741, 0
        %v870 = vsel %vm847, %v742, 0
        %v873 = vsel %vm847, %v743, 0
        %v876 = vsel %vm847, %v744, 0
        %v879 = vsel %vm847, %v745, 0
        %v882 = vsel %vm847, %v746, 0
        %v885 = vsel %vm847, %v747, 0
        %v888 = vsel %vm847, %v748, 0
        %v891 = vsel %vm847, %v749, 0
        %v894 = vsel %vm847, %v750, 0
        %896 = vmatprep.subr.mxu0 %v720
        %897 = vmatpush1.msra.mxu0 %v719
        %898 = vmatprep.subr.mxu0 %v722
        %899 = vmatpush1.msra.mxu0 %v721
        %900 = vmatprep.subr.mxu0 %v724
        %901 = vmatpush1.msra.mxu0 %v723
        %902 = vmatprep.subr.mxu0 %v726
        %903 = vmatpush1.msra.mxu0 %v725
        %904 = vmatprep.subr.mxu0 %v728
        %905 = vmatpush1.msra.mxu0 %v727
        %906 = vmatprep.subr.mxu0 %v730
        %907 = vmatpush1.msra.mxu0 %v729
        %908 = vmatprep.subr.mxu0 %v732
        %909 = vmatpush1.msra.mxu0 %v731
        %910 = vmatprep.subr.mxu0 %v734
        %911 = vmatpush1.msra.mxu0 %v733
        %912 = vmatprep.subr.mxu0 0.0
        %913 = vmatpush1.msra.mxu0 0.0
        %914 = vmatprep.subr.mxu0 0.0
        %915 = vmatpush1.msra.mxu0 0.0
        %916 = vmatprep.subr.mxu0 0.0
        %917 = vmatpush1.msra.mxu0 0.0
        %918 = vmatprep.subr.mxu0 0.0
        %919 = vmatpush1.msra.mxu0 0.0
        %920 = vmatprep.subr.mxu0 0.0
        %921 = vmatpush1.msra.mxu0 0.0
        %922 = vmatprep.subr.mxu0 0.0
        %923 = vmatpush1.msra.mxu0 0.0
        %924 = vmatprep.subr.mxu0 0.0
        %925 = vmatpush1.msra.mxu0 0.0
        %926 = vmatprep.subr.mxu0 0.0
        %927 = vmatpush1.msra.mxu0 0.0
        %928 = vmatprep.subr.mxu0 0.0
        %929 = vmatpush1.msra.mxu0 0.0
        %930 = vmatprep.subr.mxu0 0.0
        %931 = vmatpush1.msra.mxu0 0.0
        %932 = vmatprep.subr.mxu0 0.0
        %933 = vmatpush1.msra.mxu0 0.0
        %934 = vmatprep.subr.mxu0 0.0
        %935 = vmatpush1.msra.mxu0 0.0
        %936 = vmatprep.subr.mxu0 0.0
        %937 = vmatpush1.msra.mxu0 0.0
        %938 = vmatprep.subr.mxu0 0.0
        %939 = vmatpush1.msra.mxu0 0.0
        %940 = vmatprep.subr.mxu0 0.0
        %941 = vmatpush1.msra.mxu0 0.0
        %942 = vmatprep.subr.mxu0 0.0
        %943 = vmatpush1.msra.mxu0 0.0
        %944 = vmatprep.subr.mxu0 0.0
        %945 = vmatpush1.msra.mxu0 0.0
        %946 = vmatprep.subr.mxu0 0.0
        %947 = vmatpush1.msra.mxu0 0.0
        %948 = vmatprep.subr.mxu0 0.0
        %949 = vmatpush1.msra.mxu0 0.0
        %950 = vmatprep.subr.mxu0 0.0
        %951 = vmatpush1.msra.mxu0 0.0
        %952 = vmatprep.subr.mxu0 0.0
        %953 = vmatpush1.msra.mxu0 0.0
        %954 = vmatprep.subr.mxu0 0.0
        %955 = vmatpush1.msra.mxu0 0.0
        %956 = vmatprep.subr.mxu0 0.0
        %957 = vmatpush1.msra.mxu0 0.0
        %958 = vmatprep.subr.mxu0 0.0
        %959 = vmatpush1.msra.mxu0 0.0
        %960 = vmatprep.mubr.f32.mxu0 0.0
        %961 = vmatmul.mubr.f32.gmra.mrb[0].mxu0 %v849
        %v962 = vpop.f32.mrb[0].mxu0
        %v963 = vadd.f32 %v770, %v962
        %v964 = vpop.f32.mrb[0].mxu0
        %v965 = vadd.f32 %v770, %v964
        %966 = vmatprep.mubr.f32.mxu0 0.0
        %967 = vmatmul.mubr.f32.gmra.mrb[0].mxu0 %v852
        %v968 = vpop.f32.mrb[0].mxu0
        %v969 = vadd.f32 %v775, %v968
        %v970 = vpop.f32.mrb[0].mxu0
        %v971 = vadd.f32 %v775, %v970
        %972 = vmatprep.mubr.f32.mxu0 0.0
        %973 = vmatmul.mubr.f32.gmra.mrb[0].mxu0 %v855
        %v974 = vpop.f32.mrb[0].mxu0
        %v975 = vadd.f32 %v780, %v974
        %v976 = vpop.f32.mrb[0].mxu0
        %v977 = vadd.f32 %v780, %v976
        %978 = vmatprep.mubr.f32.mxu0 0.0
        %979 = vmatmul.mubr.f32.gmra.mrb[0].mxu0 %v858
        %v980 = vpop.f32.mrb[0].mxu0
        %v981 = vadd.f32 %v785, %v980
        %v982 = vpop.f32.mrb[0].mxu0
        %v983 = vadd.f32 %v785, %v982
        %984 = vmatprep.mubr.f32.mxu0 0.0
        %985 = vmatmul.mubr.f32.gmra.mrb[0].mxu0 %v861
        %v986 = vpop.f32.mrb[0].mxu0
        %v987 = vadd.f32 %v790, %v986
        %v988 = vpop.f32.mrb[0].mxu0
        %v989 = vadd.f32 %v790, %v988
        %990 = vmatprep.mubr.f32.mxu0 0.0
        %991 = vmatmul.mubr.f32.gmra.mrb[0].mxu0 %v864
        %v992 = vpop.f32.mrb[0].mxu0
        %v993 = vadd.f32 %v795, %v992
        %v994 = vpop.f32.mrb[0].mxu0
        %v995 = vadd.f32 %v795, %v994
        %996 = vmatprep.mubr.f32.mxu0 0.0
        %997 = vmatmul.mubr.f32.gmra.mrb[0].mxu0 %v867
        %v998 = vpop.f32.mrb[0].mxu0
        %v999 = vadd.f32 %v800, %v998
        %v1000 = vpop.f32.mrb[0].mxu0
        %v1001 = vadd.f32 %v800, %v1000
        %1002 = vmatprep.mubr.f32.mxu0 0.0
        %1003 = vmatmul.mubr.f32.gmra.mrb[0].mxu0 %v870
        %v1004 = vpop.f32.mrb[0].mxu0
        %v1005 = vadd.f32 %v805, %v1004
        %v1006 = vpop.f32.mrb[0].mxu0
        %v1007 = vadd.f32 %v805, %v1006
        %1008 = vmatprep.mubr.f32.mxu0 0.0
        %1009 = vmatmul.mubr.f32.gmra.mrb[0].mxu0 %v873
        %v1010 = vpop.f32.mrb[0].mxu0
        %v1011 = vadd.f32 %v810, %v1010
        %v1012 = vpop.f32.mrb[0].mxu0
        %v1013 = vadd.f32 %v810, %v1012
        %1014 = vmatprep.mubr.f32.mxu0 0.0
        %1015 = vmatmul.mubr.f32.gmra.mrb[0].mxu0 %v876
        %v1016 = vpop.f32.mrb[0].mxu0
        %v1017 = vadd.f32 %v815, %v1016
        %v1018 = vpop.f32.mrb[0].mxu0
        %v1019 = vadd.f32 %v815, %v1018
        %1020 = vmatprep.mubr.f32.mxu0 0.0
        %1021 = vmatmul.mubr.f32.gmra.mrb[0].mxu0 %v879
        %v1022 = vpop.f32.mrb[0].mxu0
        %v1023 = vadd.f32 %v820, %v1022
        %v1024 = vpop.f32.mrb[0].mxu0
        %v1025 = vadd.f32 %v820, %v1024
        %1026 = vmatprep.mubr.f32.mxu0 0.0
        %1027 = vmatmul.mubr.f32.gmra.mrb[0].mxu0 %v882
        %v1028 = vpop.f32.mrb[0].mxu0
        %v1029 = vadd.f32 %v825, %v1028
        %v1030 = vpop.f32.mrb[0].mxu0
        %v1031 = vadd.f32 %v825, %v1030
        %1032 = vmatprep.mubr.f32.mxu0 0.0
        %1033 = vmatmul.mubr.f32.gmra.mrb[0].mxu0 %v885
        %v1034 = vpop.f32.mrb[0].mxu0
        %v1035 = vadd.f32 %v830, %v1034
        %v1036 = vpop.f32.mrb[0].mxu0
        %v1037 = vadd.f32 %v830, %v1036
        %1038 = vmatprep.mubr.f32.mxu0 0.0
        %1039 = vmatmul.mubr.f32.gmra.mrb[0].mxu0 %v888
        %v1040 = vpop.f32.mrb[0].mxu0
        %v1041 = vadd.f32 %v835, %v1040
        %v1042 = vpop.f32.mrb[0].mxu0
        %v1043 = vadd.f32 %v835, %v1042
        %1044 = vmatprep.mubr.f32.mxu0 0.0
        %1045 = vmatmul.mubr.f32.gmra.mrb[0].mxu0 %v891
        %v1046 = vpop.f32.mrb[0].mxu0
        %v1047 = vadd.f32 %v840, %v1046
        %v1048 = vpop.f32.mrb[0].mxu0
        %v1049 = vadd.f32 %v840, %v1048
        %1050 = vmatprep.mubr.f32.mxu0 0.0
        %1051 = vmatmul.mubr.f32.gmra.mrb[0].mxu0 %v894
        %v1052 = vpop.f32.mrb[0].mxu0
        %v1053 = vadd.f32 %v845, %v1052
        %v1054 = vpop.f32.mrb[0].mxu0
        %v1055 = vadd.f32 %v845, %v1054
        %1056 = vdwg.mxu0
        %v1057 = vmax.f32 %v963, 0.0
        %v1058 = vmax.f32 %v965, 0.0
        %v1059 = vmax.f32 %v969, 0.0
        %v1060 = vmax.f32 %v971, 0.0
        %v1061 = vmax.f32 %v975, 0.0
        %v1062 = vmax.f32 %v977, 0.0
        %v1063 = vmax.f32 %v981, 0.0
        %v1064 = vmax.f32 %v983, 0.0
        %v1065 = vmax.f32 %v987, 0.0
        %v1066 = vmax.f32 %v989, 0.0
        %v1067 = vmax.f32 %v993, 0.0
        %v1068 = vmax.f32 %v995, 0.0
        %v1069 = vmax.f32 %v999, 0.0
        %v1070 = vmax.f32 %v1001, 0.0
        %v1071 = vmax.f32 %v1005, 0.0
        %v1072 = vmax.f32 %v1007, 0.0
        %v1073 = vmax.f32 %v1011, 0.0
        %v1074 = vmax.f32 %v1013, 0.0
        %v1075 = vmax.f32 %v1017, 0.0
        %v1076 = vmax.f32 %v1019, 0.0
        %v1077 = vmax.f32 %v1023, 0.0
        %v1078 = vmax.f32 %v1025, 0.0
        %v1079 = vmax.f32 %v1029, 0.0
        %v1080 = vmax.f32 %v1031, 0.0
        %v1081 = vmax.f32 %v1035, 0.0
        %v1082 = vmax.f32 %v1037, 0.0
        %v1083 = vmax.f32 %v1041, 0.0
        %v1084 = vmax.f32 %v1043, 0.0
        %v1085 = vmax.f32 %v1047, 0.0
        %v1086 = vmax.f32 %v1049, 0.0
        %v1087 = vmax.f32 %v1053, 0.0
        %v1088 = vmax.f32 %v1055, 0.0
        %v1089 = vld [vmem:[%s7] sm:$0xff]
        %v1090 = vld [vmem:[%s7 + $0x8] sm:$0xff]
        %v1091 = vld [vmem:[%s7 + $0x10] sm:$0xff]
        %v1092 = vld [vmem:[%s7 + $0x18] sm:$0xff]
        %v1093 = vld [vmem:[%s8] sm:$0xff]
        %v1094 = vld [vmem:[%s8 + $0x8] sm:$0xff]
        %v1095 = vld [vmem:[%s8 + $0x10] sm:$0xff]
        %v1096 = vld [vmem:[%s8 + $0x18] sm:$0xff]
        %1098 = vset.pattern.permute.xlu0 0
        %1099 = vperm.xlu0 %1098, %v1093
        %v1100 = vpop.permute.xlu0 %1099
        %1103 = vset.pattern.permute.xlu0 0
        %1104 = vperm.xlu0 %1103, %v1094
        %v1105 = vpop.permute.xlu0 %1104
        %1108 = vset.pattern.permute.xlu0 0
        %1109 = vperm.xlu0 %1108, %v1095
        %v1110 = vpop.permute.xlu0 %1109
        %1113 = vset.pattern.permute.xlu0 0
        %1114 = vperm.xlu0 %1113, %v1096
        %v1115 = vpop.permute.xlu0 %1114
        %1117 = vmatprep.subr.mxu0 %v1058
        %1118 = vmatpush1.msra.mxu0 %v1057
        %1119 = vmatprep.subr.mxu0 %v1060
        %1120 = vmatpush1.msra.mxu0 %v1059
        %1121 = vmatprep.subr.mxu0 %v1062
        %1122 = vmatpush1.msra.mxu0 %v1061
        %1123 = vmatprep.subr.mxu0 %v1064
        %1124 = vmatpush1.msra.mxu0 %v1063
        %1125 = vmatprep.subr.mxu0 %v1066
        %1126 = vmatpush1.msra.mxu0 %v1065
        %1127 = vmatprep.subr.mxu0 %v1068
        %1128 = vmatpush1.msra.mxu0 %v1067
        %1129 = vmatprep.subr.mxu0 %v1070
        %1130 = vmatpush1.msra.mxu0 %v1069
        %1131 = vmatprep.subr.mxu0 %v1072
        %1132 = vmatpush1.msra.mxu0 %v1071
        %1133 = vmatprep.subr.mxu0 %v1074
        %1134 = vmatpush1.msra.mxu0 %v1073
        %1135 = vmatprep.subr.mxu0 %v1076
        %1136 = vmatpush1.msra.mxu0 %v1075
        %1137 = vmatprep.subr.mxu0 %v1078
        %1138 = vmatpush1.msra.mxu0 %v1077
        %1139 = vmatprep.subr.mxu0 %v1080
        %1140 = vmatpush1.msra.mxu0 %v1079
        %1141 = vmatprep.subr.mxu0 %v1082
        %1142 = vmatpush1.msra.mxu0 %v1081
        %1143 = vmatprep.subr.mxu0 %v1084
        %1144 = vmatpush1.msra.mxu0 %v1083
        %1145 = vmatprep.subr.mxu0 %v1086
        %1146 = vmatpush1.msra.mxu0 %v1085
        %1147 = vmatprep.subr.mxu0 %v1088
        %1148 = vmatpush1.msra.mxu0 %v1087
        %1149 = vmatprep.subr.mxu0 0.0
        %1150 = vmatpush1.msra.mxu0 0.0
        %1151 = vmatprep.subr.mxu0 0.0
        %1152 = vmatpush1.msra.mxu0 0.0
        %1153 = vmatprep.subr.mxu0 0.0
        %1154 = vmatpush1.msra.mxu0 0.0
        %1155 = vmatprep.subr.mxu0 0.0
        %1156 = vmatpush1.msra.mxu0 0.0
        %1157 = vmatprep.subr.mxu0 0.0
        %1158 = vmatpush1.msra.mxu0 0.0
        %1159 = vmatprep.subr.mxu0 0.0
        %1160 = vmatpush1.msra.mxu0 0.0
        %1161 = vmatprep.subr.mxu0 0.0
        %1162 = vmatpush1.msra.mxu0 0.0
        %1163 = vmatprep.subr.mxu0 0.0
        %1164 = vmatpush1.msra.mxu0 0.0
        %1165 = vmatprep.subr.mxu0 0.0
        %1166 = vmatpush1.msra.mxu0 0.0
        %1167 = vmatprep.subr.mxu0 0.0
        %1168 = vmatpush1.msra.mxu0 0.0
        %1169 = vmatprep.subr.mxu0 0.0
        %1170 = vmatpush1.msra.mxu0 0.0
        %1171 = vmatprep.subr.mxu0 0.0
        %1172 = vmatpush1.msra.mxu0 0.0
        %1173 = vmatprep.subr.mxu0 0.0
        %1174 = vmatpush1.msra.mxu0 0.0
        %1175 = vmatprep.subr.mxu0 0.0
        %1176 = vmatpush1.msra.mxu0 0.0
        %1177 = vmatprep.subr.mxu0 0.0
        %1178 = vmatpush1.msra.mxu0 0.0
        %1179 = vmatprep.subr.mxu0 0.0
        %1180 = vmatpush1.msra.mxu0 0.0
        %1181 = vmatprep.mubr.f32.mxu0 0.0
        %1182 = vmatmul.mubr.f32.gmra.mrb[0].mxu0 %v1089
        %v1183 = vpop.f32.mrb[0].mxu0
        %v1184 = vadd.f32 %v1100, %v1183
        %v1185 = vpop.f32.mrb[0].mxu0
        %v1186 = vadd.f32 %v1100, %v1185
        %1187 = vmatprep.mubr.f32.mxu0 0.0
        %1188 = vmatmul.mubr.f32.gmra.mrb[0].mxu0 %v1090
        %v1189 = vpop.f32.mrb[0].mxu0
        %v1190 = vadd.f32 %v1105, %v1189
        %v1191 = vpop.f32.mrb[0].mxu0
        %v1192 = vadd.f32 %v1105, %v1191
        %1193 = vmatprep.mubr.f32.mxu0 0.0
        %1194 = vmatmul.mubr.f32.gmra.mrb[0].mxu0 %v1091
        %v1195 = vpop.f32.mrb[0].mxu0
        %v1196 = vadd.f32 %v1110, %v1195
        %v1197 = vpop.f32.mrb[0].mxu0
        %v1198 = vadd.f32 %v1110, %v1197
        %1199 = vmatprep.mubr.f32.mxu0 0.0
        %1200 = vmatmul.mubr.f32.gmra.mrb[0].mxu0 %v1092
        %v1201 = vpop.f32.mrb[0].mxu0
        %v1202 = vadd.f32 %v1115, %v1201
        %v1203 = vpop.f32.mrb[0].mxu0
        %v1204 = vadd.f32 %v1115, %v1203
        %1205 = vdwg.mxu0
        %v1206 = vmax.f32 %v1184, 0.0
        %v1207 = vmax.f32 %v1186, 0.0
        %v1208 = vmax.f32 %v1190, 0.0
        %v1209 = vmax.f32 %v1192, 0.0
        %v1210 = vmax.f32 %v1196, 0.0
        %v1211 = vmax.f32 %v1198, 0.0
        %v1212 = vmax.f32 %v1202, 0.0
        %v1213 = vmax.f32 %v1204, 0.0
        %v1214 = vld [vmem:[%s9] sm:$0xff]
        %v1215 = vld [vmem:[%s9 + $0x8] sm:$0xff]
        %v1216 = vld [vmem:[%s10] sm:$0xff]
        %v1217 = vld [vmem:[%s10 + $0x8] sm:$0xff]
        %1219 = vset.pattern.permute.xlu0 0
        %1220 = vperm.xlu0 %1219, %v1216
        %v1221 = vpop.permute.xlu0 %1220
        %1224 = vset.pattern.permute.xlu0 0
        %1225 = vperm.xlu0 %1224, %v1217
        %v1226 = vpop.permute.xlu0 %1225
        %v1229 = vsel %vm581, %v1214, 0
        %v1232 = vsel %vm581, %v1215, 0
        %1234 = vmatprep.subr.mxu0 %v1207
        %1235 = vmatpush1.msra.mxu0 %v1206
        %1236 = vmatprep.subr.mxu0 %v1209
        %1237 = vmatpush1.msra.mxu0 %v1208
        %1238 = vmatprep.subr.mxu0 %v1211
        %1239 = vmatpush1.msra.mxu0 %v1210
        %1240 = vmatprep.subr.mxu0 %v1213
        %1241 = vmatpush1.msra.mxu0 %v1212
        %1242 = vmatprep.subr.mxu0 0.0
        %1243 = vmatpush1.msra.mxu0 0.0
        %1244 = vmatprep.subr.mxu0 0.0
        %1245 = vmatpush1.msra.mxu0 0.0
        %1246 = vmatprep.subr.mxu0 0.0
        %1247 = vmatpush1.msra.mxu0 0.0
        %1248 = vmatprep.subr.mxu0 0.0
        %1249 = vmatpush1.msra.mxu0 0.0
        %1250 = vmatprep.subr.mxu0 0.0
        %1251 = vmatpush1.msra.mxu0 0.0
        %1252 = vmatprep.subr.mxu0 0.0
        %1253 = vmatpush1.msra.mxu0 0.0
        %1254 = vmatprep.subr.mxu0 0.0
        %1255 = vmatpush1.msra.mxu0 0.0
        %1256 = vmatprep.subr.mxu0 0.0
        %1257 = vmatpush1.msra.mxu0 0.0
        %1258 = vmatprep.subr.mxu0 0.0
        %1259 = vmatpush1.msra.mxu0 0.0
        %1260 = vmatprep.subr.mxu0 0.0
        %1261 = vmatpush1.msra.mxu0 0.0
        %1262 = vmatprep.subr.mxu0 0.0
        %1263 = vmatpush1.msra.mxu0 0.0
        %1264 = vmatprep.subr.mxu0 0.0
        %1265 = vmatpush1.msra.mxu0 0.0
        %1266 = vmatprep.subr.mxu0 0.0
        %1267 = vmatpush1.msra.mxu0 0.0
        %1268 = vmatprep.subr.mxu0 0.0
        %1269 = vmatpush1.msra.mxu0 0.0
        %1270 = vmatprep.subr.mxu0 0.0
        %1271 = vmatpush1.msra.mxu0 0.0
        %1272 = vmatprep.subr.mxu0 0.0
        %1273 = vmatpush1.msra.mxu0 0.0
        %1274 = vmatprep.subr.mxu0 0.0
        %1275 = vmatpush1.msra.mxu0 0.0
        %1276 = vmatprep.subr.mxu0 0.0
        %1277 = vmatpush1.msra.mxu0 0.0
        %1278 = vmatprep.subr.mxu0 0.0
        %1279 = vmatpush1.msra.mxu0 0.0
        %1280 = vmatprep.subr.mxu0 0.0
        %1281 = vmatpush1.msra.mxu0 0.0
        %1282 = vmatprep.subr.mxu0 0.0
        %1283 = vmatpush1.msra.mxu0 0.0
        %1284 = vmatprep.subr.mxu0 0.0
        %1285 = vmatpush1.msra.mxu0 0.0
        %1286 = vmatprep.subr.mxu0 0.0
        %1287 = vmatpush1.msra.mxu0 0.0
        %1288 = vmatprep.subr.mxu0 0.0
        %1289 = vmatpush1.msra.mxu0 0.0
        %1290 = vmatprep.subr.mxu0 0.0
        %1291 = vmatpush1.msra.mxu0 0.0
        %1292 = vmatprep.subr.mxu0 0.0
        %1293 = vmatpush1.msra.mxu0 0.0
        %1294 = vmatprep.subr.mxu0 0.0
        %1295 = vmatpush1.msra.mxu0 0.0
        %1296 = vmatprep.subr.mxu0 0.0
        %1297 = vmatpush1.msra.mxu0 0.0
        %1298 = vmatprep.mubr.f32.mxu0 0.0
        %1299 = vmatmul.mubr.f32.gmra.mrb[0].mxu0 %v1229
        %v1300 = vpop.f32.mrb[0].mxu0
        %v1301 = vadd.f32 %v1221, %v1300
        %v1302 = vpop.f32.mrb[0].mxu0
        %v1303 = vadd.f32 %v1221, %v1302
        %1304 = vmatprep.mubr.f32.mxu0 0.0
        %1305 = vmatmul.mubr.f32.gmra.mrb[0].mxu0 %v1232
        %v1306 = vpop.f32.mrb[0].mxu0
        %v1307 = vadd.f32 %v1226, %v1306
        %v1308 = vpop.f32.mrb[0].mxu0
        %v1309 = vadd.f32 %v1226, %v1308
        %1310 = vdwg.mxu0
        %v1311 = vmax.f32 %v1301, 0.0
        %v1312 = vmax.f32 %v1303, 0.0
        %v1313 = vmax.f32 %v1307, 0.0
        %v1314 = vmax.f32 %v1309, 0.0
        %v1315 = vld [vmem:[%s11] sm:$0xff]
        %v1316 = vld [vmem:[%s11 + $0x8] sm:$0xff]
        %1318 = vset.pattern.permute.xlu0 0
        %1319 = vperm.xlu0 %1318, %v1315
        %v1320 = vpop.permute.xlu0 %1319
        %1323 = vset.pattern.permute.xlu0 0
        %1324 = vperm.xlu0 %1323, %v1316
        %v1325 = vpop.permute.xlu0 %1324
        %v1327 = vmul.f32 %v1320, %v1311
        %v1328 = vmul.f32 %v1320, %v1312
        %v1329 = vmul.f32 %v1325, %v1313
        %v1330 = vmul.f32 %v1325, %v1314
        %v1331 = vadd.f32 %v1327, %v1329
        %v1332 = vrot.slane %v1331, 4
        %v1333 = vadd.f32 %v1331, %v1332
        %v1334 = vrot.slane %v1333, 2
        %v1335 = vadd.f32 %v1333, %v1334
        %v1336 = vrot.slane %v1335, 1
        %v1337 = vadd.f32 %v1335, %v1336
        %v1338 = vadd.f32 %v1328, %v1330
        %v1339 = vrot.slane %v1338, 4
        %v1340 = vadd.f32 %v1338, %v1339
        %v1341 = vrot.slane %v1340, 2
        %v1342 = vadd.f32 %v1340, %v1341
        %v1343 = vrot.slane %v1342, 1
        %v1344 = vadd.f32 %v1342, %v1343
        %v1345 = vld [vmem:[#allocation2] sm:$0x1]
        %1347 = vset.pattern.permute.xlu0 0
        %1348 = vperm.xlu0 %1347, %v1345
        %v1349 = vpop.permute.xlu0 %1348
        %v1351 = vlaneseq
        %v1352 = vshrl.u32 %v1351, 7
        %v1353 = vsub.s32 0, %v1352
        %v1354 = vrot.slane %v1349, %v1353
        %v1355 = vadd.f32 %v1337, %v1354
        %v1356 = vadd.f32 %v1344, %v1354
        %v1359 = vcombine.low %v1355, %v1356
        %v1361 = vunpack.c.l.s4 1966171168
        %v1362 = vunpack.c.0.s8 %v1361
        %v1363 = vlaneseq
        %v1364 = vshrl.u32 %v1363, 7
        %v1365 = vsub.s32 %v1362, %v1364
        %v1366 = vrot.slane %v1359, %v1365
        %v1368 = vunpack.c.l.s4 1966171168
        %v1369 = vunpack.c.0.s8 %v1368
        %v1370 = vlaneseq
        %v1371 = vshrl.u32 %v1370, 7
        %v1372 = vsub.s32 %v1369, %v1371
        %v1373 = vrot.slane %v1366, %v1372
        %v1375 = vlaneseq
        %vm1376 = vcmp.ge.s32.totalorder %v1375, 0
        %vm1377 = vcmp.lt.s32.totalorder %v1375, 256
        %vm1378 = vmand %vm1376, %vm1377
        %1379 = vst.msk [vmem:[%s434] sm:$0x3] %vm1378, %v1373
        %s1380 = sand.u32 %s315, 1
        %s1381 = scalar_lea.sflag [#allocation4], %s1380
        %s1382 = sand.u32 %s315, 1
        %s1383 = smul.addr %s1382, 2
        %s1384 = scalar_lea.vmem [#allocation3], %s1383
        // Predicated region
        $region73: #{tpu_custom_call.1} parent=71 // pred_check
          %p1385 = pneg %p325
        $region74: #{tpu_custom_call.1} parent=71 // pred_check_branch
          %1387 = sbr.rel (%p1385) target = $region76
        $region75: #{tpu_custom_call.1} parent=71 // pred_region
          %s1388 = smul.u32 2, %s29
          %s1390 = ssub.s32 32, 32
          %1391 = vsyncadd %s1381, %s1390
          %s1392 = smul.addr %s1388, 16
          %s1393 = scalar_lea.hbm %s13, %s1392
          %s1395 = sshll.u32 %s1384, 4
          %s1396 = int_to_ptr.vmem [resolvable:$true] %s1395
          %1398 = dma.vmem_to_hbm [thread:$0]  %s1396, 32, %s1393, %s1381
        $region76: #{tpu_custom_call.1} parent=71 // pred_fallthru
          _
      $region72: #{tpu_custom_call.1} parent=5 // pred_fallthru
        _
      %p1399 = scmp.le.s32.totalorder 2, %s24
      // Predicated region
      $region77: #{tpu_custom_call.1} parent=5 // pred_check
        %p1400 = pneg %p1399
      $region78: #{tpu_custom_call.1} parent=5 // pred_check_branch
        %1402 = sbr.rel (%p1400) target = $region80
      $region79: #{tpu_custom_call.1} parent=5 // pred_region
        %s1403 = ssub.s32 %s24, 2
        // Predicated region
        $region81: #{tpu_custom_call.1} parent=79 // pred_check
          %p1404 = pneg %p331
        $region82: #{tpu_custom_call.1} parent=79 // pred_check_branch
          %1406 = sbr.rel (%p1404) target = $region84
        $region83: #{tpu_custom_call.1} parent=79 // pred_region
          %s1407 = sand.u32 %s316, 1
          %s1408 = scalar_lea.sflag [#allocation4], %s1407
          %s1409 = sand.u32 %s316, 1
          %s1410 = smul.addr %s1409, 2
          %s1411 = scalar_lea.vmem [#allocation3], %s1410
          %1412 = dma.done %s1408, 32
        $region84: #{tpu_custom_call.1} parent=79 // pred_fallthru
          _
      $region80: #{tpu_custom_call.1} parent=5 // pred_fallthru
        _
    $region6: #{tpu_custom_call.1} parent=1 // loop_footer
      %s28 = sadd.s32 1, %s24
    $region7: #{tpu_custom_call.1} parent=1 // loop_footer_branch
      %23 = sbr.rel target = $region3
    $region8: #{tpu_custom_call.1} parent=1 // loop_exit
      _
    %1413 = vsyncpa [#allocation4], 1
    %s1414 = scalar_lea.sflag [#allocation4], 1
    %1415 = vsyncpa %s1414, 1

</llo_original>
